<compile_context>
chip_gen: v7x
topology: tpu7x:2x2x1
jax: 0.10.0
libtpu: 0.0.40
codegen_flags: <defaults>
</compile_context>

<pallas_src>
from math import pi as PI

import jax
import jax.numpy as jnp
from jax.experimental import pallas as pl
from jax.experimental.pallas import tpu as pltpu


# ---- bounded-range sine: Cody-Waite reduction by pi + degree-11 odd poly ----
_INV_PI = 0.3183098861837907
# pi = _PI_A + _PI_B + _PI_C, each with few mantissa bits so k*PI_x is exact
# for the small integer k (<= num_radial) that occurs here.
_PI_A = 3.140625
_PI_B = 9.67502593994140625e-4
_PI_C = 1.509957990978376e-7
_S3 = -1.0 / 6.0
_S5 = 1.0 / 120.0
_S7 = -1.0 / 5040.0
_S9 = 1.0 / 362880.0
_S11 = -1.0 / 39916800.0


def _bounded_sin(arg):
    """sin(arg) for arg >= 0 and moderate magnitude (here <= num_radial*pi)."""
    k = jnp.floor(arg * _INV_PI + 0.5)                      # nearest multiple of pi
    r = ((arg - k * _PI_A) - k * _PI_B) - k * _PI_C          # r in [-pi/2, pi/2]
    parity = k - 2.0 * jnp.floor(k * 0.5)                    # 0.0 even / 1.0 odd
    sign = 1.0 - 2.0 * parity
    r2 = r * r
    poly = _S11
    poly = poly * r2 + _S9
    poly = poly * r2 + _S7
    poly = poly * r2 + _S5
    poly = poly * r2 + _S3
    return sign * (r + r * r2 * poly)


def _make_dist_emb_kernel(cutoff: float, envelope_exponent: int, out_dtype,
                          use_fast_sin: bool):
    p = envelope_exponent + 1
    a = -(p + 1) * (p + 2) / 2.0
    b = float(p * (p + 2))
    c = -p * (p + 1) / 2.0
    inv_cutoff = 1.0 / float(cutoff)

    def kernel(dist_ref, freq_ref, out_ref):
        # dist_ref: (1, tE)  -- edges on the lane axis (lane-dense)
        # freq_ref: (R, 1)   -- radial frequencies on the sublane axis
        # out_ref : (R, tE)
        x = dist_ref[...] * inv_cutoff                # constant mul, no divide
        # Guard the undefined lanes of the partial final block against 1/0;
        # semantically benign (out -> freq as x -> 0) and masked on writeback.
        x = jnp.maximum(x, 1e-6)
        # Envelope polynomial on the (1, tE) row (cheap; amortized over R rows).
        x_pow_p0 = x ** (p - 1)
        x_pow_p1 = x_pow_p0 * x
        x_pow_p2 = x_pow_p1 * x
        env = 1.0 / x + a * x_pow_p0 + b * x_pow_p1 + c * x_pow_p2   # (1, tE)
        arg = freq_ref[...] * x                                      # (R, tE)
        s = _bounded_sin(arg) if use_fast_sin else jnp.sin(arg)
        out_ref[...] = (env * s).astype(out_dtype)

    return kernel


def _round_up(v: int, m: int) -> int:
    return ((v + m - 1) // m) * m


def dist_emb_pallas(dist, freq, *, cutoff=5.0, envelope_exponent=5,
                    block_e=65536, out_dtype=jnp.float32,
                    use_fast_sin=True, min_grid_steps=4):
    """SphereNet dist_emb forward as a Pallas TPU kernel.

    Args:
      dist: (E,) distances, assumed > 0 as in the reference module.
      freq: (num_radial,) trainable frequencies.
      out_dtype: jnp.float32 for exact parity; jnp.bfloat16 halves the dominant
        output HBM traffic (intermediate math stays f32 either way).
    Returns:
      (num_radial, E) radial embedding in lane-dense layout — the transpose of
      the PyTorch module's (E, num_radial).  Take `.T` (or fuse the transpose
      into the downstream matmul) if the PyTorch layout is required.
    """
    E = int(dist.shape[0])
    R = int(freq.shape[0])

    # Lane-dense tiling: 128-multiple tiles, clamped to the problem size, and
    # kept small enough that the grid has >= min_grid_steps steps (v7x megacore
    # load balance) whenever E is big enough to allow it.
    block_e = max(128, _round_up(int(block_e), 128))
    block_e = min(block_e, _round_up(max(E, 1), 128))
    if E >= min_grid_steps * 128:
        block_e = min(block_e, _round_up(pl.cdiv(E, min_grid_steps), 128))

    grid = (pl.cdiv(E, block_e),)

    dist2d = dist.astype(jnp.float32).reshape(1, E)          # edges -> lane axis
    freq2d = freq.astype(jnp.float32).reshape(R, 1)          # radial -> sublanes

    kernel = _make_dist_emb_kernel(float(cutoff), int(envelope_exponent),
                                   out_dtype, bool(use_fast_sin))

    out = pl.pallas_call(
        kernel,
        out_shape=jax.ShapeDtypeStruct((R, E), out_dtype),
        grid_spec=pltpu.PrefetchScalarGridSpec(
            num_scalar_prefetch=0,
            grid=grid,
            in_specs=[
                pl.BlockSpec((1, block_e), lambda i: (0, i)),
                pl.BlockSpec((R, 1), lambda i: (0, 0)),
            ],
            out_specs=pl.BlockSpec((R, block_e), lambda i: (0, i)),
        ),
        compiler_params=pltpu.CompilerParams(
            dimension_semantics=("parallel",),
        ),
    )(dist2d, freq2d)
    return out


def dist_emb_ref(dist, freq, cutoff=5.0, envelope_exponent=5):
    """Pure-JAX reference mirroring the PyTorch module exactly: (E, R)."""
    p = envelope_exponent + 1
    a = -(p + 1) * (p + 2) / 2.0
    b = float(p * (p + 2))
    c = -p * (p + 1) / 2.0
    x = dist[:, None] / cutoff
    x_pow_p0 = x ** (p - 1)
    x_pow_p1 = x_pow_p0 * x
    x_pow_p2 = x_pow_p1 * x
    env = 1.0 / x + a * x_pow_p0 + b * x_pow_p1 + c * x_pow_p2
    return env * jnp.sin(freq[None, :] * x)


if __name__ == "__main__":
    num_radial = 8
    cutoff = 5.0
    envelope_exponent = 5
    E = 1000  # deliberately NOT a multiple of 128: exercises the partial block

    # Deterministic parameter init (reset_parameters): freq = [1..R] * pi
    freq = jnp.arange(1, num_radial + 1, dtype=jnp.float32) * PI

    # Deterministic example distances in (0, cutoff) (module assumes dist > 0).
    key = jax.random.PRNGKey(0)
    dist = jax.random.uniform(key, (E,), dtype=jnp.float32,
                              minval=0.1, maxval=cutoff)

    ref = dist_emb_ref(dist, freq, cutoff=cutoff,
                       envelope_exponent=envelope_exponent)

    # f32 output: strict parity with the PyTorch/JAX reference.
    out = dist_emb_pallas(dist, freq, cutoff=cutoff,
                          envelope_exponent=envelope_exponent)
    out = jax.block_until_ready(out)
    assert out.shape == (num_radial, E), out.shape
    max_err = float(jnp.max(jnp.abs(out.T - ref)))
    assert jnp.allclose(out.T, ref, atol=1e-5, rtol=1e-5), max_err

    # bf16 output path: halves the dominant writeback traffic; loose tolerance.
    out_bf16 = jax.block_until_ready(
        dist_emb_pallas(dist, freq, cutoff=cutoff,
                        envelope_exponent=envelope_exponent,
                        out_dtype=jnp.bfloat16))
    assert out_bf16.dtype == jnp.bfloat16
    assert jnp.allclose(out_bf16.astype(jnp.float32).T, ref,
                        atol=2e-2, rtol=2e-2)

    print("KERNEL_OK")
</pallas_src>

<mosaic_0001>
module attributes {stable_mosaic.version = 11 : i64} {
  func.func @kernel(%arg0: i32, %arg1: memref<1x256xf32, #tpu.memory_space<vmem>>, %arg2: memref<8x1xf32, #tpu.memory_space<vmem>>, %arg3: memref<8x256xf32, #tpu.memory_space<vmem>>) attributes {dimension_semantics = [#tpu.dimension_semantics<parallel>], iteration_bounds = array<i64: 4>, scalar_prefetch = 0 : i64, scratch_operands = 0 : i64, tpu.core_type = #tpu.core_type<tc>, window_params = [{transform_indices = @transform_0, window_bounds = array<i64: 1, 256>}, {pipeline_mode = #tpu.pipeline_mode<synchronous>, transform_indices = @transform_1, window_bounds = array<i64: 8, 1>}, {transform_indices = @transform_2, window_bounds = array<i64: 8, 256>}]} {
    %c0 = arith.constant 0 : index
    %c0_0 = arith.constant 0 : index
    %0 = vector.load %arg1[%c0, %c0_0] : memref<1x256xf32, #tpu.memory_space<vmem>>, vector<1x256xf32>
    %cst = arith.constant 2.000000e-01 : f32
    %1 = vector.broadcast %cst : f32 to vector<1x256xf32>
    %2 = arith.mulf %0, %1 : vector<1x256xf32>
    %cst_1 = arith.constant 9.99999997E-7 : f32
    %3 = vector.broadcast %cst_1 : f32 to vector<1x256xf32>
    %4 = arith.maximumf %2, %3 : vector<1x256xf32>
    %5 = arith.mulf %4, %4 : vector<1x256xf32>
    %6 = arith.mulf %5, %5 : vector<1x256xf32>
    %7 = arith.mulf %4, %6 : vector<1x256xf32>
    %8 = arith.mulf %7, %4 : vector<1x256xf32>
    %9 = arith.mulf %8, %4 : vector<1x256xf32>
    %cst_2 = arith.constant 1.000000e+00 : f32
    %10 = vector.broadcast %cst_2 : f32 to vector<1x256xf32>
    %11 = arith.divf %10, %4 : vector<1x256xf32>
    %cst_3 = arith.constant -2.800000e+01 : f32
    %12 = vector.broadcast %cst_3 : f32 to vector<1x256xf32>
    %13 = arith.mulf %12, %7 : vector<1x256xf32>
    %14 = arith.addf %11, %13 : vector<1x256xf32>
    %cst_4 = arith.constant 4.800000e+01 : f32
    %15 = vector.broadcast %cst_4 : f32 to vector<1x256xf32>
    %16 = arith.mulf %15, %8 : vector<1x256xf32>
    %17 = arith.addf %14, %16 : vector<1x256xf32>
    %cst_5 = arith.constant -2.100000e+01 : f32
    %18 = vector.broadcast %cst_5 : f32 to vector<1x256xf32>
    %19 = arith.mulf %18, %9 : vector<1x256xf32>
    %20 = arith.addf %17, %19 : vector<1x256xf32>
    %c0_6 = arith.constant 0 : index
    %c0_7 = arith.constant 0 : index
    %21 = vector.load %arg2[%c0_6, %c0_7] : memref<8x1xf32, #tpu.memory_space<vmem>>, vector<8x1xf32>
    %22 = vector.broadcast %21 : vector<8x1xf32> to vector<8x256xf32>
    %23 = vector.broadcast %4 : vector<1x256xf32> to vector<8x256xf32>
    %24 = arith.mulf %22, %23 : vector<8x256xf32>
    %cst_8 = arith.constant 0.318309873 : f32
    %25 = vector.broadcast %cst_8 : f32 to vector<8x256xf32>
    %26 = arith.mulf %24, %25 : vector<8x256xf32>
    %cst_9 = arith.constant 5.000000e-01 : f32
    %27 = vector.broadcast %cst_9 : f32 to vector<8x256xf32>
    %28 = arith.addf %26, %27 : vector<8x256xf32>
    %29 = math.floor %28 : vector<8x256xf32>
    %cst_10 = arith.constant 3.140625 : f32
    %30 = vector.broadcast %cst_10 : f32 to vector<8x256xf32>
    %31 = arith.mulf %29, %30 : vector<8x256xf32>
    %32 = arith.subf %24, %31 : vector<8x256xf32>
    %cst_11 = arith.constant 9.67502593E-4 : f32
    %33 = vector.broadcast %cst_11 : f32 to vector<8x256xf32>
    %34 = arith.mulf %29, %33 : vector<8x256xf32>
    %35 = arith.subf %32, %34 : vector<8x256xf32>
    %cst_12 = arith.constant 1.50995803E-7 : f32
    %36 = vector.broadcast %cst_12 : f32 to vector<8x256xf32>
    %37 = arith.mulf %29, %36 : vector<8x256xf32>
    %38 = arith.subf %35, %37 : vector<8x256xf32>
    %cst_13 = arith.constant 5.000000e-01 : f32
    %39 = vector.broadcast %cst_13 : f32 to vector<8x256xf32>
    %40 = arith.mulf %29, %39 : vector<8x256xf32>
    %41 = math.floor %40 : vector<8x256xf32>
    %cst_14 = arith.constant 2.000000e+00 : f32
    %42 = vector.broadcast %cst_14 : f32 to vector<8x256xf32>
    %43 = arith.mulf %42, %41 : vector<8x256xf32>
    %44 = arith.subf %29, %43 : vector<8x256xf32>
    %cst_15 = arith.constant 2.000000e+00 : f32
    %45 = vector.broadcast %cst_15 : f32 to vector<8x256xf32>
    %46 = arith.mulf %45, %44 : vector<8x256xf32>
    %cst_16 = arith.constant 1.000000e+00 : f32
    %47 = vector.broadcast %cst_16 : f32 to vector<8x256xf32>
    %48 = arith.subf %47, %46 : vector<8x256xf32>
    %49 = arith.mulf %38, %38 : vector<8x256xf32>
    %cst_17 = arith.constant -2.50521079E-8 : f32
    %50 = vector.broadcast %cst_17 : f32 to vector<8x256xf32>
    %51 = arith.mulf %50, %49 : vector<8x256xf32>
    %cst_18 = arith.constant 2.75573188E-6 : f32
    %52 = vector.broadcast %cst_18 : f32 to vector<8x256xf32>
    %53 = arith.addf %51, %52 : vector<8x256xf32>
    %54 = arith.mulf %53, %49 : vector<8x256xf32>
    %cst_19 = arith.constant -1.98412701E-4 : f32
    %55 = vector.broadcast %cst_19 : f32 to vector<8x256xf32>
    %56 = arith.addf %54, %55 : vector<8x256xf32>
    %57 = arith.mulf %56, %49 : vector<8x256xf32>
    %cst_20 = arith.constant 0.00833333377 : f32
    %58 = vector.broadcast %cst_20 : f32 to vector<8x256xf32>
    %59 = arith.addf %57, %58 : vector<8x256xf32>
    %60 = arith.mulf %59, %49 : vector<8x256xf32>
    %cst_21 = arith.constant -0.166666672 : f32
    %61 = vector.broadcast %cst_21 : f32 to vector<8x256xf32>
    %62 = arith.addf %60, %61 : vector<8x256xf32>
    %63 = arith.mulf %38, %49 : vector<8x256xf32>
    %64 = arith.mulf %63, %62 : vector<8x256xf32>
    %65 = arith.addf %38, %64 : vector<8x256xf32>
    %66 = arith.mulf %48, %65 : vector<8x256xf32>
    %67 = vector.broadcast %20 : vector<1x256xf32> to vector<8x256xf32>
    %68 = arith.mulf %67, %66 : vector<8x256xf32>
    %c0_22 = arith.constant 0 : index
    %c0_23 = arith.constant 0 : index
    %69 = vector.load %arg3[%c0_22, %c0_23] : memref<8x256xf32, #tpu.memory_space<vmem>>, vector<8x256xf32>
    tpu.vector_store %arg3[%c0_22, %c0_23], %68 {strides = array<i32>} : memref<8x256xf32, #tpu.memory_space<vmem>>, vector<8x256xf32>,
    return
  }
  func.func @transform_0(%arg0: i32) -> (i32, i32) {
    %c0_i32 = arith.constant 0 : i32
    %c0_i32_0 = arith.constant 0 : i32
    return %c0_i32, %arg0 : i32, i32
  }
  func.func @transform_1(%arg0: i32) -> (i32, i32) {
    %c0_i32 = arith.constant 0 : i32
    %c0_i32_0 = arith.constant 0 : i32
    %c0_i32_1 = arith.constant 0 : i32
    return %c0_i32, %c0_i32_0 : i32, i32
  }
  func.func @transform_2(%arg0: i32) -> (i32, i32) {
    %c0_i32 = arith.constant 0 : i32
    %c0_i32_0 = arith.constant 0 : i32
    return %c0_i32, %arg0 : i32, i32
  }
}

</mosaic_0001>

<llo_original>
// kernel: tpu_custom_call.1
$region0: #{tpu_custom_call.1}
  #allocation0 [shape = 'u32[]', space=smem, size = 0x4, offset = 0x4, fixed_abs, tag = 'smem constant byte address 0x4 - core index']
  #allocation1 [shape = 'u32[144,128]{1,0:T(1,128)}', space=vmem, size = 0x12000, scoped, tag = 'internal scratch']
  %s0 = inlined_call_operand.vmem [shape: f32[1,1000], index: 0, kind: input, shape index: {}]
  %s1 = inlined_call_operand.vmem [shape: f32[8,1], index: 1, kind: input, shape index: {}]
  %s2 = inlined_call_operand.hbm [shape: f32[8,1000], index: 2, kind: output, shape index: {}]
  %s3 = sld [smem:[#allocation0]]
  $region41: #{tpu_custom_call.1} parent=0
    _
  %s5 = ssub.s32 1, %s3
  %s6 = scalar_select 0, %s5, %s3
  $region1: #{tpu_custom_call.1} parent=0
    #allocation2 [shape = 'u8[16384]{0}', space=vmem, size = 0x4000, scoped, tag = 'output window, operand 0']
    #allocation3 [shape = 's32[2]{0}', space=sflag, size = 0x8, scoped, tag = 'scoped memory for tpu_custom_call.1']
    %7 = vsyncpa [#allocation3], 0
    %s8 = scalar_lea.sflag [#allocation3], 1
    %9 = vsyncpa %s8, 0
    loop: start=0, step=1, limit=6
    $region2: #{tpu_custom_call.1} parent=1 // loop_pre_header
      _
    $region3: #{tpu_custom_call.1} parent=1 // loop_header
      %s11 = sphi 0, %s15
      %p12 = scmp.ge.s32.totalorder %s11, 6
      %s21 = sphi 0, %s23
      %s24 = sphi 0, %s21
      %s25 = sphi 0, %s24
      %s41 = sphi 0, %s25
      %s45 = sphi 0, %s45
      %s47 = sphi 0, %s45
      %s48 = sphi 0, %s47
      %s62 = sphi 0, %s48
      %s68 = sphi 0, %s70
      %s71 = sphi 0, %s68
      %s72 = sphi 0, %s71
      %s88 = sphi 0, %s72
    $region4: #{tpu_custom_call.1} parent=1 // loop_header_branch
      %14 = sbr.rel (%p12) target = $region8
    $region5: #{tpu_custom_call.1} parent=1 // loop_body
      %s16 = ssub.s32 %s11, 1
      %s17 = ssub.s32 %s11, 2
      %s18 = sadd.s32 %s11, 1
      %s19 = ssub.s32 %s11, %s18
      %p20 = scmp.eq.s32.totalorder %s19, 0
      %s22 = sadd.s32 %s21, 1
      %s23 = scalar_select %p20, %s21, %s22
      %p26 = pneg %p20
      %p27 = scmp.eq.s32.totalorder %s11, 3
      %p28 = por %p26, %p27
      %p29 = scmp.ne.s32.totalorder %s21, %s24
      %p30 = scmp.eq.s32.totalorder %s11, 0
      %p31 = por %p29, %p30
      %p32 = scmp.ne.s32.totalorder %s21, %s24
      %p33 = scmp.eq.s32.totalorder %s16, 3
      %p34 = por %p32, %p33
      %p35 = scmp.ne.s32.totalorder %s24, %s25
      %p36 = scmp.eq.s32.totalorder %s16, 0
      %p37 = por %p35, %p36
      %p38 = scmp.ne.s32.totalorder %s24, %s25
      %p39 = scmp.eq.s32.totalorder %s17, 3
      %p40 = por %p38, %p39
      %p42 = scmp.ne.s32.totalorder %s25, %s41
      %p43 = scmp.eq.s32.totalorder %s17, 0
      %p44 = por %p42, %p43
      %s46 = sadd.s32 %s45, 1
      %p49 = scmp.eq.s32.totalorder %s11, 3
      %p50 = scmp.ne.s32.totalorder %s45, %s47
      %p51 = scmp.eq.s32.totalorder %s11, 0
      %p52 = por %p50, %p51
      %p53 = scmp.ne.s32.totalorder %s45, %s47
      %p54 = scmp.eq.s32.totalorder %s16, 3
      %p55 = por %p53, %p54
      %p56 = scmp.ne.s32.totalorder %s47, %s48
      %p57 = scmp.eq.s32.totalorder %s16, 0
      %p58 = por %p56, %p57
      %p59 = scmp.ne.s32.totalorder %s47, %s48
      %p60 = scmp.eq.s32.totalorder %s17, 3
      %p61 = por %p59, %p60
      %p63 = scmp.ne.s32.totalorder %s48, %s62
      %p64 = scmp.eq.s32.totalorder %s17, 0
      %p65 = por %p63, %p64
      %s66 = ssub.s32 %s11, %s18
      %p67 = scmp.eq.s32.totalorder %s66, 0
      %s69 = sadd.s32 %s68, 1
      %s70 = scalar_select %p67, %s68, %s69
      %p73 = pneg %p67
      %p74 = scmp.eq.s32.totalorder %s11, 3
      %p75 = por %p73, %p74
      %p76 = scmp.ne.s32.totalorder %s68, %s71
      %p77 = scmp.eq.s32.totalorder %s11, 0
      %p78 = por %p76, %p77
      %p79 = scmp.ne.s32.totalorder %s68, %s71
      %p80 = scmp.eq.s32.totalorder %s16, 3
      %p81 = por %p79, %p80
      %p82 = scmp.ne.s32.totalorder %s71, %s72
      %p83 = scmp.eq.s32.totalorder %s16, 0
      %p84 = por %p82, %p83
      %p85 = scmp.ne.s32.totalorder %s71, %s72
      %p86 = scmp.eq.s32.totalorder %s17, 3
      %p87 = por %p85, %p86
      %p89 = scmp.ne.s32.totalorder %s72, %s88
      %p90 = scmp.eq.s32.totalorder %s17, 0
      %p91 = por %p89, %p90
      %p92 = scmp.le.s32.totalorder 1, %s11
      %p93 = scmp.lt.s32.totalorder %s11, 5
      %p94 = pnand %p92, %p93
      %p95 = pneg %p94
      // Predicated region
      $region9: #{tpu_custom_call.1} parent=5 // pred_check
        _
      $region10: #{tpu_custom_call.1} parent=5 // pred_check_branch
        %97 = sbr.rel (%p94) target = $region12
      $region11: #{tpu_custom_call.1} parent=5 // pred_region
        %s98 = ssub.s32 %s11, 1
        // Predicated region
        $region13: #{tpu_custom_call.1} parent=11 // pred_check
          %p99 = pneg %p58
        $region14: #{tpu_custom_call.1} parent=11 // pred_check_branch
          %101 = sbr.rel (%p99) target = $region16
        $region15: #{tpu_custom_call.1} parent=11 // pred_region
          _
        $region16: #{tpu_custom_call.1} parent=11 // pred_fallthru
          _
      $region12: #{tpu_custom_call.1} parent=5 // pred_fallthru
        _
      %p102 = scmp.lt.s32.totalorder %s11, 4
      // Predicated region
      $region17: #{tpu_custom_call.1} parent=5 // pred_check
        %p103 = pneg %p102
      $region18: #{tpu_custom_call.1} parent=5 // pred_check_branch
        %105 = sbr.rel (%p103) target = $region20
      $region19: #{tpu_custom_call.1} parent=5 // pred_region
        // Predicated region
        $region21: #{tpu_custom_call.1} parent=19 // pred_check
          %p106 = pneg %p31
        $region22: #{tpu_custom_call.1} parent=19 // pred_check_branch
          %108 = sbr.rel (%p106) target = $region24
        $region23: #{tpu_custom_call.1} parent=19 // pred_region
          %s109 = smul.u32 2, %s11
          %p110 = scmp.lt.s32.totalorder %s109, 7
          %s111 = scalar_select %p110, %s109, 7
          %s112 = scalar_lea.vmem %s0, %s111
          %s113 = smul.u32 2, %s11
        $region24: #{tpu_custom_call.1} parent=19 // pred_fallthru
          _
      $region20: #{tpu_custom_call.1} parent=5 // pred_fallthru
        _
      %p114 = scmp.le.s32.totalorder 1, %s11
      %p115 = scmp.lt.s32.totalorder %s11, 5
      %p116 = pnand %p114, %p115
      %p117 = pneg %p116
      // Predicated region
      $region25: #{tpu_custom_call.1} parent=5 // pred_check
        _
      $region26: #{tpu_custom_call.1} parent=5 // pred_check_branch
        %119 = sbr.rel (%p116) target = $region28
      $region27: #{tpu_custom_call.1} parent=5 // pred_region
        %s120 = ssub.s32 %s11, 1
        %s121 = smul.u32 2, %s16
        %p122 = scmp.lt.s32.totalorder %s121, 7
        %s123 = scalar_select %p122, %s121, 7
        %s124 = scalar_lea.vmem %s0, %s123
        %p125 = pneg %p37
        %p126 = pneg %p34
        %p127 = pneg %p58
        %p128 = pneg %p55
        %p129 = pneg %p84
        %p130 = pneg %p81
        %s131 = sand.u32 %s71, 1
        %s132 = scalar_lea.sflag [#allocation3], %s131
        %s133 = sand.u32 %s71, 1
        %s134 = smul.addr %s133, 16
        %s135 = scalar_lea.vmem [#allocation2], %s134
        %s136 = smul.u32 2, %s16
        %p137 = scmp.lt.s32.totalorder %s136, 7
        %s138 = scalar_select %p137, %s136, 7
        %s139 = scalar_lea.vmem %s0, %s138
        %s140 = smul.u32 2, %s16
        %s141 = smul.u32 2, %s16
        %v142 = vld [vmem:[%s139] sm:$0x3]
        %v143 = vmul.f32 %v142, 0.2
        %v144 = vmax.f32 %v143, 1e-06
        %v145 = vmul.f32 %v144, %v144
        %v146 = vmul.f32 %v145, %v145
        %v147 = vmul.f32 %v144, %v146
        %v148 = vmul.f32 %v147, %v144
        %v149 = vmul.f32 %v148, %v144
        %v150 = vrcp.pop %v144
        %v151 = vmul.f32 1.0, %v150
        %v152 = vmul.f32 %v147, -28.0
        %v153 = vadd.f32 %v151, %v152
        %v154 = vmul.f32 %v148, 48.0
        %v155 = vadd.f32 %v153, %v154
        %v156 = vmul.f32 %v149, -21.0
        %v157 = vadd.f32 %v155, %v156
        %v158 = vld [vmem:[%s1] sm:$0xff]
        %160 = vset.pattern.permute.xlu0 0
        %161 = vperm.xlu0 %160, %v158
        %v162 = vpop.permute.xlu0 %161
        %v165 = vlaneseq
        %v166 = vshrl.u32 %v165, 7
        %v167 = vsub.s32 0, %v166
        %v168 = vrot.slane %v144, %v167
        %v169 = vlaneseq
        %v170 = vshrl.u32 %v169, 7
        %v171 = vsub.s32 1, %v170
        %v172 = vrot.slane %v144, %v171
        %v175 = vmul.f32 %v162, %v168
        %v176 = vmul.f32 %v162, %v172
        %v177 = vmul.f32 %v175, 0.31830987
        %v178 = vmul.f32 %v176, 0.31830987
        %v179 = vadd.f32 %v177, 0.5
        %v180 = vadd.f32 %v178, 0.5
        %v181 = vfloor.f32 %v179
        %v182 = vfloor.f32 %v180
        %v183 = vmul.f32 %v181, 3.140625
        %v184 = vmul.f32 %v182, 3.140625
        %v185 = vsub.f32 %v175, %v183
        %v186 = vsub.f32 %v176, %v184
        %v187 = vmul.f32 %v181, 0.0009675026
        %v188 = vmul.f32 %v182, 0.0009675026
        %v189 = vsub.f32 %v185, %v187
        %v190 = vsub.f32 %v186, %v188
        %v191 = vmul.f32 %v181, 1.509958e-07
        %v192 = vmul.f32 %v182, 1.509958e-07
        %v193 = vsub.f32 %v189, %v191
        %v194 = vsub.f32 %v190, %v192
        %v195 = vmul.f32 %v181, 0.5
        %v196 = vmul.f32 %v182, 0.5
        %v197 = vfloor.f32 %v195
        %v198 = vfloor.f32 %v196
        %v199 = vmul.f32 %v197, 2.0
        %v200 = vmul.f32 %v198, 2.0
        %v201 = vsub.f32 %v181, %v199
        %v202 = vsub.f32 %v182, %v200
        %v203 = vmul.f32 %v201, 2.0
        %v204 = vmul.f32 %v202, 2.0
        %v205 = vsub.f32 1.0, %v203
        %v206 = vsub.f32 1.0, %v204
        %v207 = vmul.f32 %v193, %v193
        %v208 = vmul.f32 %v194, %v194
        %v209 = vmul.f32 %v207, -2.5052108e-08
        %v210 = vmul.f32 %v208, -2.5052108e-08
        %v211 = vadd.f32 %v209, 2.7557319e-06
        %v212 = vadd.f32 %v210, 2.7557319e-06
        %v213 = vmul.f32 %v211, %v207
        %v214 = vmul.f32 %v212, %v208
        %v215 = vadd.f32 %v213, -0.0001984127
        %v216 = vadd.f32 %v214, -0.0001984127
        %v217 = vmul.f32 %v215, %v207
        %v218 = vmul.f32 %v216, %v208
        %v219 = vadd.f32 %v217, 0.008333334
        %v220 = vadd.f32 %v218, 0.008333334
        %v221 = vmul.f32 %v219, %v207
        %v222 = vmul.f32 %v220, %v208
        %v223 = vadd.f32 %v221, -0.16666667
        %v224 = vadd.f32 %v222, -0.16666667
        %v225 = vmul.f32 %v193, %v207
        %v226 = vmul.f32 %v194, %v208
        %v227 = vmul.f32 %v225, %v223
        %v228 = vmul.f32 %v226, %v224
        %v229 = vadd.f32 %v193, %v227
        %v230 = vadd.f32 %v194, %v228
        %v231 = vmul.f32 %v205, %v229
        %v232 = vmul.f32 %v206, %v230
        %v234 = vlaneseq
        %v235 = vshrl.u32 %v234, 7
        %v236 = vsub.s32 0, %v235
        %v237 = vrot.slane %v157, %v236
        %v238 = vlaneseq
        %v239 = vshrl.u32 %v238, 7
        %v240 = vsub.s32 1, %v239
        %v241 = vrot.slane %v157, %v240
        %v244 = vmul.f32 %v237, %v231
        %v245 = vmul.f32 %v241, %v232
        %246 = vst [vmem:[%s135] sm:$0xff] %v244
        %247 = vst [vmem:[%s135 + $0x8] sm:$0xff] %v245
        %s248 = sand.u32 %s71, 1
        %s249 = scalar_lea.sflag [#allocation3], %s248
        %s250 = sand.u32 %s71, 1
        %s251 = smul.addr %s250, 16
        %s252 = scalar_lea.vmem [#allocation2], %s251
        // Predicated region
        $region29: #{tpu_custom_call.1} parent=27 // pred_check
          %p253 = pneg %p81
        $region30: #{tpu_custom_call.1} parent=27 // pred_check_branch
          %255 = sbr.rel (%p253) target = $region32
        $region31: #{tpu_custom_call.1} parent=27 // pred_region
          %s256 = smul.u32 2, %s16
          %s258 = ssub.s32 256, 256
          %259 = vsyncadd %s249, %s258
          %s260 = smul.addr %s256, 128
          %s261 = scalar_lea.hbm %s2, %s260
          %s263 = sshll.u32 %s252, 4
          %s264 = int_to_ptr.vmem [resolvable:$true] %s263
          %266 = dma.vmem_to_hbm [thread:$0]  %s264, 256, %s261, %s249
        $region32: #{tpu_custom_call.1} parent=27 // pred_fallthru
          _
      $region28: #{tpu_custom_call.1} parent=5 // pred_fallthru
        _
      %p267 = scmp.le.s32.totalorder 2, %s11
      // Predicated region
      $region33: #{tpu_custom_call.1} parent=5 // pred_check
        %p268 = pneg %p267
      $region34: #{tpu_custom_call.1} parent=5 // pred_check_branch
        %270 = sbr.rel (%p268) target = $region36
      $region35: #{tpu_custom_call.1} parent=5 // pred_region
        %s271 = ssub.s32 %s11, 2
        // Predicated region
        $region37: #{tpu_custom_call.1} parent=35 // pred_check
          %p272 = pneg %p87
        $region38: #{tpu_custom_call.1} parent=35 // pred_check_branch
          %274 = sbr.rel (%p272) target = $region40
        $region39: #{tpu_custom_call.1} parent=35 // pred_region
          %s275 = sand.u32 %s72, 1
          %s276 = scalar_lea.sflag [#allocation3], %s275
          %s277 = sand.u32 %s72, 1
          %s278 = smul.addr %s277, 16
          %s279 = scalar_lea.vmem [#allocation2], %s278
          %280 = dma.done %s276, 256
        $region40: #{tpu_custom_call.1} parent=35 // pred_fallthru
          _
      $region36: #{tpu_custom_call.1} parent=5 // pred_fallthru
        _
    $region6: #{tpu_custom_call.1} parent=1 // loop_footer
      %s15 = sadd.s32 1, %s11
    $region7: #{tpu_custom_call.1} parent=1 // loop_footer_branch
      %10 = sbr.rel target = $region3
    $region8: #{tpu_custom_call.1} parent=1 // loop_exit
      _
    %281 = vsyncpa [#allocation3], 1
    %s282 = scalar_lea.sflag [#allocation3], 1
    %283 = vsyncpa %s282, 1

</llo_original>
